<compile_context>
chip_gen: v6e
topology: v6e:2x2x1
jax: 0.10.0
libtpu: 0.0.40
codegen_flags: <defaults>
</compile_context>

<pallas_src>
import functools
import itertools
import math
from typing import Optional, Sequence

import numpy as np
import jax
import jax.numpy as jnp
from jax import lax
from jax.experimental import pallas as pl
from jax.experimental.pallas import tpu as pltpu


def _select_table(idx, values):
    """Per-element lookup of Python-float `values` by integer `idx` (no array consts)."""
    out = jnp.full(idx.shape, float(values[0]), dtype=jnp.float32)
    for k in range(1, len(values)):
        out = jnp.where(idx == k, float(values[k]), out)
    return out


def _anchor_kernel(meta_ref, out_ref, *, block, uw_half, uh_half,
                   lvl_start, lvl_c0, lvl_inv_nx, lvl_nx, lvl_sw, lvl_sh):
    """Write one (block, 4*A) tile of anchors in the final (location, anchor, coord) layout.

    meta_ref (SMEM f32, shape (8, num_steps)), per step:
      row 0: 1.0 if the whole block lies in a single pyramid level else 0.0
      rows 1..6 (fast path only): x0+0.5, y0+0.5, nx, 1/nx, stride_w, stride_h
    out_ref: (block, 4*A) f32; sublanes are consecutive global feature-grid locations,
      lanes are (anchor, coord) pairs with coord order (x1, y1, x2, y2).
    """
    i = pl.program_id(0)
    nlanes = out_ref.shape[1]                       # 4 * num_anchors (36)

    # ---- (anchor, coord) lane constants, built from scalar immediates (one vreg) ----
    lane = lax.broadcasted_iota(jnp.int32, (1, nlanes), 1)
    coord = lane & 3                                # 0:x1 1:y1 2:x2 3:y2
    anchor = lane >> 2                              # product(scales, ratios) order
    is_x = (coord & 1) == 0                         # x-type coords use cx & stride_w
    sign = jnp.where(coord >= 2, 1.0, -1.0).astype(jnp.float32)
    half_u = sign * jnp.where(is_x, _select_table(anchor, uw_half),
                              _select_table(anchor, uh_half))        # (1, nlanes)

    # Per-location (sublane) offset within this block.
    jcol = lax.broadcasted_iota(jnp.int32, (block, 1), 0).astype(jnp.float32)

    def emit(px, py, swv, shv):
        centers = jnp.where(is_x, px, py)                             # (block, nlanes)
        offs = half_u * jnp.where(is_x, swv, shv)                     # lane offsets * stride
        out_ref[...] = (centers + offs).astype(out_ref.dtype)

    # ---------- fast path: the whole block lies inside one pyramid level ----------
    @pl.when(meta_ref[0, i] > 0.5)
    def _single_level():
        x0 = meta_ref[1, i]            # first location's x index + 0.5
        y0 = meta_ref[2, i]            # first location's y index + 0.5
        nx = meta_ref[3, i]
        inv_nx = meta_ref[4, i]        # 1/nx, precomputed host-side
        sw = meta_ref[5, i]
        sh = meta_ref[6, i]
        t = x0 + jcol                                  # x index + 0.5, may wrap past nx
        w = jnp.floor(t * inv_nx)                      # rows wrapped (exact; see header note)
        px = (t - w * nx) * sw                         # pixel-space x center
        py = (y0 + w) * sh                             # pixel-space y center
        emit(px, py, sw, sh)

    # ---------- generic path: block straddles >= 2 levels (per-location level select) ----------
    @pl.when(meta_ref[0, i] < 0.5)
    def _multi_level():
        g = jcol + (i * block).astype(jnp.float32)     # global location index (exact int in f32)
        c0v = jnp.float32(lvl_c0[0])
        invv = jnp.float32(lvl_inv_nx[0])
        nxv = jnp.float32(lvl_nx[0])
        swv = jnp.float32(lvl_sw[0])
        shv = jnp.float32(lvl_sh[0])
        for l in range(1, len(lvl_start)):             # <= 5 levels, unrolled
            m = g >= lvl_start[l]
            c0v = jnp.where(m, jnp.float32(lvl_c0[l]), c0v)
            invv = jnp.where(m, jnp.float32(lvl_inv_nx[l]), invv)
            nxv = jnp.where(m, jnp.float32(lvl_nx[l]), nxv)
            swv = jnp.where(m, jnp.float32(lvl_sw[l]), swv)
            shv = jnp.where(m, jnp.float32(lvl_sh[l]), shv)
        t = g + c0v                                    # local index within level + 0.5
        w = jnp.floor(t * invv)                        # y index (same exactness argument)
        px = (t - w * nxv) * swv
        py = (w + 0.5) * shv
        emit(px, py, swv, shv)


def anchor_generator(inputs,
                     features: Sequence[jax.Array],
                     anchor_scale: float = 4.0,
                     scales=(2 ** 0, 2 ** (1.0 / 3.0), 2 ** (2.0 / 3.0)),
                     aspect_ratios=(0.5, 1.0, 2.0),
                     block: Optional[int] = None,
                     max_block: int = 4096):
    """Pallas equivalent of AnchorGenerator.forward (inputs is NCHW)."""
    dtype = inputs.dtype
    _, _, image_h, image_w = inputs.shape
    combos = list(itertools.product(scales, aspect_ratios))
    num_anchors = len(combos)
    nlanes = 4 * num_anchors                            # 36

    # Static per-anchor half extents per unit stride.
    uw_half = tuple(0.5 * anchor_scale * s * math.sqrt(1.0 / r) for s, r in combos)
    uh_half = tuple(0.5 * anchor_scale * s * math.sqrt(r) for s, r in combos)

    # Static per-level geometry.
    levels = []
    for feat in features:
        fh, fw = feat.shape[2], feat.shape[3]
        sh, sw = image_h // fh, image_w // fw
        if image_w % sw != 0 or image_h % sh != 0:
            raise ValueError('input size must be divided by the stride.')
        nx, ny = image_w // sw, image_h // sh           # anchor centers per axis
        levels.append((nx, ny, sh, sw))

    hw_list = [nx * ny for nx, ny, _, _ in levels]
    total = int(sum(hw_list))
    starts = np.concatenate([[0], np.cumsum(hw_list)])  # level start offsets, len L+1

    # Block of consecutive global locations per grid step: big enough to amortize the
    # ~0.35us per-step overhead, >= 2 balanced steps when possible (v7x megacore),
    # capped so the double-buffered (block, 36) f32 tile stays ~1 MiB of VMEM.
    if block is None:
        half = -(-total // 2)
        block = min(max_block, max(8, ((half + 7) // 8) * 8))
    else:
        block = max(8, ((int(block) + 7) // 8) * 8)
    num_steps = -(-total // block)

    # Per-step SMEM meta: fast-path flag + single-level geometry (f32, bitcast-free).
    meta = np.zeros((8, num_steps), np.float32)
    for s in range(num_steps):
        lo = s * block
        hi = min(lo + block, total)
        l = int(np.searchsorted(starts, lo, side='right')) - 1
        if hi <= starts[l + 1]:                          # whole step inside level l
            nx, ny, sh, sw = levels[l]
            local = lo - int(starts[l])
            meta[:, s] = (1.0, local % nx + 0.5, local // nx + 0.5, float(nx),
                          float(np.float32(1.0) / np.float32(nx)),
                          float(sw), float(sh), 0.0)
        # else: flag stays 0.0 -> generic multi-level path (baked constants)
    meta = jnp.asarray(meta)

    kernel = functools.partial(
        _anchor_kernel, block=block, uw_half=uw_half, uh_half=uh_half,
        lvl_start=tuple(float(x) for x in starts[:-1]),
        lvl_c0=tuple(0.5 - float(x) for x in starts[:-1]),
        lvl_inv_nx=tuple(float(np.float32(1.0) / np.float32(nx)) for nx, _, _, _ in levels),
        lvl_nx=tuple(float(nx) for nx, _, _, _ in levels),
        lvl_sw=tuple(float(sw) for _, _, _, sw in levels),
        lvl_sh=tuple(float(sh) for _, _, sh, _ in levels))

    slab = pl.pallas_call(
        kernel,
        out_shape=jax.ShapeDtypeStruct((total, nlanes), jnp.float32),
        grid_spec=pltpu.PrefetchScalarGridSpec(
            num_scalar_prefetch=1,
            grid=(num_steps,),
            in_specs=[],
            out_specs=pl.BlockSpec((block, nlanes), lambda i, m: (i, 0)),
        ),
        compiler_params=pltpu.CompilerParams(
            dimension_semantics=("parallel",)),          # disjoint output blocks per step
    )(meta)

    # (total, 36) row-major == (1, total*9, 4) row-major: pure bitcast reshape, no copy.
    anchors = slab.reshape(1, total * num_anchors, 4)
    if dtype != jnp.float32:
        anchors = anchors.astype(dtype)                  # math stays f32; only cast output
    return anchors


def _numpy_reference(image_h, image_w, feature_sizes,
                     anchor_scale=4.0,
                     scales=(2 ** 0, 2 ** (1.0 / 3.0), 2 ** (2.0 / 3.0)),
                     aspect_ratios=(0.5, 1.0, 2.0)):
    """Direct NumPy port of the PyTorch forward for verification."""
    all_levels = []
    for fh, fw in feature_sizes:
        sh, sw = image_h // fh, image_w // fw
        per_level = []
        for scale, ratio in itertools.product(scales, aspect_ratios):
            bw = anchor_scale * sw
            bh = anchor_scale * sh
            aw = bw * scale * math.sqrt(1.0 / ratio)
            ah = bh * scale * math.sqrt(ratio)
            cx = np.arange(sw / 2.0, image_w, sw, dtype=np.float32)
            cy = np.arange(sh / 2.0, image_h, sh, dtype=np.float32)
            cxg, cyg = np.meshgrid(cx, cy, indexing='ij')
            cxf, cyf = cxg.T.reshape(-1), cyg.T.reshape(-1)
            a = np.stack((cxf - aw / 2.0, cyf - ah / 2.0,
                          cxf + aw / 2.0, cyf + ah / 2.0), axis=1)
            per_level.append(a[:, None, :])
        per_level = np.concatenate(per_level, axis=1).reshape(-1, 4)
        all_levels.append(per_level)
    return np.concatenate(all_levels, axis=0)[None]


if __name__ == "__main__":
    key = jax.random.PRNGKey(0)
    keys = jax.random.split(key, 8)

    # Case 1: image 16x16, FPN-style levels with strides 2, 4, 8.
    # Default block -> 2 steps: one single-level fast-path step + one multi-level step.
    inputs = jax.random.normal(keys[0], (2, 4, 16, 16), dtype=jnp.float32)
    features = (
        jax.random.normal(keys[1], (2, 8, 8, 8), dtype=jnp.float32),
        jax.random.normal(keys[2], (2, 8, 4, 4), dtype=jnp.float32),
        jax.random.normal(keys[3], (2, 8, 2, 2), dtype=jnp.float32),
    )
    ref = _numpy_reference(16, 16, [(8, 8), (4, 4), (2, 2)])
    anchors = jax.block_until_ready(anchor_generator(inputs, features))
    assert anchors.shape == ref.shape, (anchors.shape, ref.shape)
    np.testing.assert_allclose(np.asarray(anchors), ref, rtol=1e-5, atol=1e-4)

    # Same case with a tiny forced block: many fast-path steps + padded final block.
    anchors_b = jax.block_until_ready(anchor_generator(inputs, features, block=16))
    np.testing.assert_allclose(np.asarray(anchors_b), ref, rtol=1e-5, atol=1e-4)

    # Case 2: non-power-of-two grid widths (strides 2, 4, 6) exercise the generic
    # row-wrap path and (with block=16) fast-path steps starting mid-row (x0, y0 != 0).
    inputs2 = jax.random.normal(keys[4], (2, 4, 12, 12), dtype=jnp.float32)
    features2 = (
        jax.random.normal(keys[5], (2, 8, 6, 6), dtype=jnp.float32),
        jax.random.normal(keys[6], (2, 8, 3, 3), dtype=jnp.float32),
        jax.random.normal(keys[7], (2, 8, 2, 2), dtype=jnp.float32),
    )
    ref2 = _numpy_reference(12, 12, [(6, 6), (3, 3), (2, 2)])
    anchors2 = jax.block_until_ready(anchor_generator(inputs2, features2))
    assert anchors2.shape == ref2.shape, (anchors2.shape, ref2.shape)
    np.testing.assert_allclose(np.asarray(anchors2), ref2, rtol=1e-5, atol=1e-4)

    anchors2_b = jax.block_until_ready(anchor_generator(inputs2, features2, block=16))
    np.testing.assert_allclose(np.asarray(anchors2_b), ref2, rtol=1e-5, atol=1e-4)

    print("KERNEL_OK")
</pallas_src>

<mosaic_0001>
module attributes {stable_mosaic.version = 11 : i64} {
  func.func @_anchor_kernel(%arg0: i32, %arg1: memref<8x2xf32, #tpu.memory_space<smem>>, %arg2: memref<48x36xf32, #tpu.memory_space<vmem>>) attributes {dimension_semantics = [#tpu.dimension_semantics<parallel>], iteration_bounds = array<i64: 2>, scalar_prefetch = 1 : i64, scratch_operands = 0 : i64, tpu.core_type = #tpu.core_type<tc>, window_params = [{transform_indices = @transform_0, window_bounds = array<i64: 48, 36>}]} {
    %0 = tpu.iota {dimensions = array<i32: 1>} : vector<1x36xi32>
    %c3_i32 = arith.constant 3 : i32
    %1 = vector.broadcast %c3_i32 : i32 to vector<1x36xi32>
    %2 = arith.andi %0, %1 : vector<1x36xi32>
    %c2_i32 = arith.constant 2 : i32
    %3 = vector.broadcast %c2_i32 : i32 to vector<1x36xi32>
    %4 = arith.shrsi %0, %3 : vector<1x36xi32>
    %c1_i32 = arith.constant 1 : i32
    %5 = vector.broadcast %c1_i32 : i32 to vector<1x36xi32>
    %6 = arith.andi %2, %5 : vector<1x36xi32>
    %c0_i32 = arith.constant 0 : i32
    %7 = vector.broadcast %c0_i32 : i32 to vector<1x36xi32>
    %8 = arith.cmpi eq, %6, %7 : vector<1x36xi32>
    %c2_i32_0 = arith.constant 2 : i32
    %9 = vector.broadcast %c2_i32_0 : i32 to vector<1x36xi32>
    %10 = arith.cmpi sge, %2, %9 : vector<1x36xi32>
    %cst = arith.constant 1.000000e+00 : f32
    %cst_1 = arith.constant -1.000000e+00 : f32
    %11 = vector.broadcast %cst : f32 to vector<1x36xf32>
    %12 = vector.broadcast %cst_1 : f32 to vector<1x36xf32>
    %13 = arith.select %10, %11, %12 : vector<1x36xi1>, vector<1x36xf32>
    %cst_2 = arith.constant 2.82842708 : f32
    %14 = vector.broadcast %cst_2 : f32 to vector<1x36xf32>
    %c1_i32_3 = arith.constant 1 : i32
    %15 = vector.broadcast %c1_i32_3 : i32 to vector<1x36xi32>
    %16 = arith.cmpi eq, %4, %15 : vector<1x36xi32>
    %cst_4 = arith.constant 2.000000e+00 : f32
    %17 = vector.broadcast %cst_4 : f32 to vector<1x36xf32>
    %18 = arith.select %16, %17, %14 : vector<1x36xi1>, vector<1x36xf32>
    %c2_i32_5 = arith.constant 2 : i32
    %19 = vector.broadcast %c2_i32_5 : i32 to vector<1x36xi32>
    %20 = arith.cmpi eq, %4, %19 : vector<1x36xi32>
    %cst_6 = arith.constant 1.41421354 : f32
    %21 = vector.broadcast %cst_6 : f32 to vector<1x36xf32>
    %22 = arith.select %20, %21, %18 : vector<1x36xi1>, vector<1x36xf32>
    %c3_i32_7 = arith.constant 3 : i32
    %23 = vector.broadcast %c3_i32_7 : i32 to vector<1x36xi32>
    %24 = arith.cmpi eq, %4, %23 : vector<1x36xi32>
    %cst_8 = arith.constant 3.56359482 : f32
    %25 = vector.broadcast %cst_8 : f32 to vector<1x36xf32>
    %26 = arith.select %24, %25, %22 : vector<1x36xi1>, vector<1x36xf32>
    %c4_i32 = arith.constant 4 : i32
    %27 = vector.broadcast %c4_i32 : i32 to vector<1x36xi32>
    %28 = arith.cmpi eq, %4, %27 : vector<1x36xi32>
    %cst_9 = arith.constant 2.51984215 : f32
    %29 = vector.broadcast %cst_9 : f32 to vector<1x36xf32>
    %30 = arith.select %28, %29, %26 : vector<1x36xi1>, vector<1x36xf32>
    %c5_i32 = arith.constant 5 : i32
    %31 = vector.broadcast %c5_i32 : i32 to vector<1x36xi32>
    %32 = arith.cmpi eq, %4, %31 : vector<1x36xi32>
    %cst_10 = arith.constant 1.78179741 : f32
    %33 = vector.broadcast %cst_10 : f32 to vector<1x36xf32>
    %34 = arith.select %32, %33, %30 : vector<1x36xi1>, vector<1x36xf32>
    %c6_i32 = arith.constant 6 : i32
    %35 = vector.broadcast %c6_i32 : i32 to vector<1x36xi32>
    %36 = arith.cmpi eq, %4, %35 : vector<1x36xi32>
    %cst_11 = arith.constant 4.48984814 : f32
    %37 = vector.broadcast %cst_11 : f32 to vector<1x36xf32>
    %38 = arith.select %36, %37, %34 : vector<1x36xi1>, vector<1x36xf32>
    %c7_i32 = arith.constant 7 : i32
    %39 = vector.broadcast %c7_i32 : i32 to vector<1x36xi32>
    %40 = arith.cmpi eq, %4, %39 : vector<1x36xi32>
    %cst_12 = arith.constant 3.17480206 : f32
    %41 = vector.broadcast %cst_12 : f32 to vector<1x36xf32>
    %42 = arith.select %40, %41, %38 : vector<1x36xi1>, vector<1x36xf32>
    %c8_i32 = arith.constant 8 : i32
    %43 = vector.broadcast %c8_i32 : i32 to vector<1x36xi32>
    %44 = arith.cmpi eq, %4, %43 : vector<1x36xi32>
    %cst_13 = arith.constant 2.24492407 : f32
    %45 = vector.broadcast %cst_13 : f32 to vector<1x36xf32>
    %46 = arith.select %44, %45, %42 : vector<1x36xi1>, vector<1x36xf32>
    %cst_14 = arith.constant 1.41421354 : f32
    %47 = vector.broadcast %cst_14 : f32 to vector<1x36xf32>
    %c1_i32_15 = arith.constant 1 : i32
    %48 = vector.broadcast %c1_i32_15 : i32 to vector<1x36xi32>
    %49 = arith.cmpi eq, %4, %48 : vector<1x36xi32>
    %cst_16 = arith.constant 2.000000e+00 : f32
    %50 = vector.broadcast %cst_16 : f32 to vector<1x36xf32>
    %51 = arith.select %49, %50, %47 : vector<1x36xi1>, vector<1x36xf32>
    %c2_i32_17 = arith.constant 2 : i32
    %52 = vector.broadcast %c2_i32_17 : i32 to vector<1x36xi32>
    %53 = arith.cmpi eq, %4, %52 : vector<1x36xi32>
    %cst_18 = arith.constant 2.82842708 : f32
    %54 = vector.broadcast %cst_18 : f32 to vector<1x36xf32>
    %55 = arith.select %53, %54, %51 : vector<1x36xi1>, vector<1x36xf32>
    %c3_i32_19 = arith.constant 3 : i32
    %56 = vector.broadcast %c3_i32_19 : i32 to vector<1x36xi32>
    %57 = arith.cmpi eq, %4, %56 : vector<1x36xi32>
    %cst_20 = arith.constant 1.78179741 : f32
    %58 = vector.broadcast %cst_20 : f32 to vector<1x36xf32>
    %59 = arith.select %57, %58, %55 : vector<1x36xi1>, vector<1x36xf32>
    %c4_i32_21 = arith.constant 4 : i32
    %60 = vector.broadcast %c4_i32_21 : i32 to vector<1x36xi32>
    %61 = arith.cmpi eq, %4, %60 : vector<1x36xi32>
    %cst_22 = arith.constant 2.51984215 : f32
    %62 = vector.broadcast %cst_22 : f32 to vector<1x36xf32>
    %63 = arith.select %61, %62, %59 : vector<1x36xi1>, vector<1x36xf32>
    %c5_i32_23 = arith.constant 5 : i32
    %64 = vector.broadcast %c5_i32_23 : i32 to vector<1x36xi32>
    %65 = arith.cmpi eq, %4, %64 : vector<1x36xi32>
    %cst_24 = arith.constant 3.56359482 : f32
    %66 = vector.broadcast %cst_24 : f32 to vector<1x36xf32>
    %67 = arith.select %65, %66, %63 : vector<1x36xi1>, vector<1x36xf32>
    %c6_i32_25 = arith.constant 6 : i32
    %68 = vector.broadcast %c6_i32_25 : i32 to vector<1x36xi32>
    %69 = arith.cmpi eq, %4, %68 : vector<1x36xi32>
    %cst_26 = arith.constant 2.24492407 : f32
    %70 = vector.broadcast %cst_26 : f32 to vector<1x36xf32>
    %71 = arith.select %69, %70, %67 : vector<1x36xi1>, vector<1x36xf32>
    %c7_i32_27 = arith.constant 7 : i32
    %72 = vector.broadcast %c7_i32_27 : i32 to vector<1x36xi32>
    %73 = arith.cmpi eq, %4, %72 : vector<1x36xi32>
    %cst_28 = arith.constant 3.17480206 : f32
    %74 = vector.broadcast %cst_28 : f32 to vector<1x36xf32>
    %75 = arith.select %73, %74, %71 : vector<1x36xi1>, vector<1x36xf32>
    %c8_i32_29 = arith.constant 8 : i32
    %76 = vector.broadcast %c8_i32_29 : i32 to vector<1x36xi32>
    %77 = arith.cmpi eq, %4, %76 : vector<1x36xi32>
    %cst_30 = arith.constant 4.48984814 : f32
    %78 = vector.broadcast %cst_30 : f32 to vector<1x36xf32>
    %79 = arith.select %77, %78, %75 : vector<1x36xi1>, vector<1x36xf32>
    %80 = arith.select %8, %46, %79 : vector<1x36xi1>, vector<1x36xf32>
    %81 = arith.mulf %13, %80 : vector<1x36xf32>
    %82 = tpu.iota {dimensions = array<i32: 0>} : vector<48x1xi32>
    %83 = arith.sitofp %82 : vector<48x1xi32> to vector<48x1xf32>
    %c0 = arith.constant 0 : index
    %84 = arith.index_cast %arg0 : i32 to index
    %85 = memref.load %arg1[%c0, %84] : memref<8x2xf32, #tpu.memory_space<smem>>
    %cst_31 = arith.constant 5.000000e-01 : f32
    %86 = arith.cmpf ogt, %85, %cst_31 : f32
    %87 = arith.extui %86 : i1 to i32
    %c0_i32_32 = arith.constant 0 : i32
    %88 = arith.cmpi ne, %87, %c0_i32_32 : i32
    scf.if %88 {
      %c1 = arith.constant 1 : index
      %94 = arith.index_cast %arg0 : i32 to index
      %95 = memref.load %arg1[%c1, %94] : memref<8x2xf32, #tpu.memory_space<smem>>
      %c2 = arith.constant 2 : index
      %96 = arith.index_cast %arg0 : i32 to index
      %97 = memref.load %arg1[%c2, %96] : memref<8x2xf32, #tpu.memory_space<smem>>
      %c3 = arith.constant 3 : index
      %98 = arith.index_cast %arg0 : i32 to index
      %99 = memref.load %arg1[%c3, %98] : memref<8x2xf32, #tpu.memory_space<smem>>
      %c4 = arith.constant 4 : index
      %100 = arith.index_cast %arg0 : i32 to index
      %101 = memref.load %arg1[%c4, %100] : memref<8x2xf32, #tpu.memory_space<smem>>
      %c5 = arith.constant 5 : index
      %102 = arith.index_cast %arg0 : i32 to index
      %103 = memref.load %arg1[%c5, %102] : memref<8x2xf32, #tpu.memory_space<smem>>
      %c6 = arith.constant 6 : index
      %104 = arith.index_cast %arg0 : i32 to index
      %105 = memref.load %arg1[%c6, %104] : memref<8x2xf32, #tpu.memory_space<smem>>
      %106 = vector.broadcast %95 : f32 to vector<48x1xf32>
      %107 = arith.addf %106, %83 : vector<48x1xf32>
      %108 = vector.broadcast %101 : f32 to vector<48x1xf32>
      %109 = arith.mulf %107, %108 : vector<48x1xf32>
      %110 = math.floor %109 : vector<48x1xf32>
      %111 = vector.broadcast %99 : f32 to vector<48x1xf32>
      %112 = arith.mulf %110, %111 : vector<48x1xf32>
      %113 = arith.subf %107, %112 : vector<48x1xf32>
      %114 = vector.broadcast %103 : f32 to vector<48x1xf32>
      %115 = arith.mulf %113, %114 : vector<48x1xf32>
      %116 = vector.broadcast %97 : f32 to vector<48x1xf32>
      %117 = arith.addf %116, %110 : vector<48x1xf32>
      %118 = vector.broadcast %105 : f32 to vector<48x1xf32>
      %119 = arith.mulf %117, %118 : vector<48x1xf32>
      %120 = vector.shape_cast %8 : vector<1x36xi1> to vector<1x36xi1>
      %121 = vector.broadcast %120 : vector<1x36xi1> to vector<48x36xi1>
      %122 = vector.shape_cast %115 : vector<48x1xf32> to vector<48x1xf32>
      %123 = vector.broadcast %122 : vector<48x1xf32> to vector<48x36xf32>
      %124 = vector.shape_cast %119 : vector<48x1xf32> to vector<48x1xf32>
      %125 = vector.broadcast %124 : vector<48x1xf32> to vector<48x36xf32>
      %126 = arith.select %121, %123, %125 : vector<48x36xi1>, vector<48x36xf32>
      %127 = vector.broadcast %103 : f32 to vector<1x36xf32>
      %128 = vector.broadcast %105 : f32 to vector<1x36xf32>
      %129 = arith.select %8, %127, %128 : vector<1x36xi1>, vector<1x36xf32>
      %130 = arith.mulf %81, %129 : vector<1x36xf32>
      %131 = vector.broadcast %130 : vector<1x36xf32> to vector<48x36xf32>
      %132 = arith.addf %126, %131 : vector<48x36xf32>
      %c0_36 = arith.constant 0 : index
      %c0_37 = arith.constant 0 : index
      %133 = vector.load %arg2[%c0_36, %c0_37] : memref<48x36xf32, #tpu.memory_space<vmem>>, vector<48x36xf32>
      tpu.vector_store %arg2[%c0_36, %c0_37], %132 {strides = array<i32>} : memref<48x36xf32, #tpu.memory_space<vmem>>, vector<48x36xf32>,
    } else {
    }
    %c0_33 = arith.constant 0 : index
    %89 = arith.index_cast %arg0 : i32 to index
    %90 = memref.load %arg1[%c0_33, %89] : memref<8x2xf32, #tpu.memory_space<smem>>
    %cst_34 = arith.constant 5.000000e-01 : f32
    %91 = arith.cmpf olt, %90, %cst_34 : f32
    %92 = arith.extui %91 : i1 to i32
    %c0_i32_35 = arith.constant 0 : i32
    %93 = arith.cmpi ne, %92, %c0_i32_35 : i32
    scf.if %93 {
      %c48_i32 = arith.constant 48 : i32
      %94 = arith.muli %arg0, %c48_i32 : i32
      %95 = arith.sitofp %94 : i32 to f32
      %96 = vector.broadcast %95 : f32 to vector<48x1xf32>
      %97 = arith.addf %83, %96 : vector<48x1xf32>
      %cst_36 = arith.constant 6.400000e+01 : f32
      %98 = vector.broadcast %cst_36 : f32 to vector<48x1xf32>
      %99 = arith.cmpf oge, %97, %98 : vector<48x1xf32>
      %cst_37 = arith.constant -6.350000e+01 : f32
      %cst_38 = arith.constant 5.000000e-01 : f32
      %100 = vector.broadcast %cst_37 : f32 to vector<48x1xf32>
      %101 = vector.broadcast %cst_38 : f32 to vector<48x1xf32>
      %102 = arith.select %99, %100, %101 : vector<48x1xi1>, vector<48x1xf32>
      %cst_39 = arith.constant 2.500000e-01 : f32
      %cst_40 = arith.constant 1.250000e-01 : f32
      %103 = vector.broadcast %cst_39 : f32 to vector<48x1xf32>
      %104 = vector.broadcast %cst_40 : f32 to vector<48x1xf32>
      %105 = arith.select %99, %103, %104 : vector<48x1xi1>, vector<48x1xf32>
      %cst_41 = arith.constant 4.000000e+00 : f32
      %cst_42 = arith.constant 8.000000e+00 : f32
      %106 = vector.broadcast %cst_41 : f32 to vector<48x1xf32>
      %107 = vector.broadcast %cst_42 : f32 to vector<48x1xf32>
      %108 = arith.select %99, %106, %107 : vector<48x1xi1>, vector<48x1xf32>
      %cst_43 = arith.constant 4.000000e+00 : f32
      %cst_44 = arith.constant 2.000000e+00 : f32
      %109 = vector.broadcast %cst_43 : f32 to vector<48x1xf32>
      %110 = vector.broadcast %cst_44 : f32 to vector<48x1xf32>
      %111 = arith.select %99, %109, %110 : vector<48x1xi1>, vector<48x1xf32>
      %cst_45 = arith.constant 4.000000e+00 : f32
      %cst_46 = arith.constant 2.000000e+00 : f32
      %112 = vector.broadcast %cst_45 : f32 to vector<48x1xf32>
      %113 = vector.broadcast %cst_46 : f32 to vector<48x1xf32>
      %114 = arith.select %99, %112, %113 : vector<48x1xi1>, vector<48x1xf32>
      %cst_47 = arith.constant 8.000000e+01 : f32
      %115 = vector.broadcast %cst_47 : f32 to vector<48x1xf32>
      %116 = arith.cmpf oge, %97, %115 : vector<48x1xf32>
      %cst_48 = arith.constant -7.950000e+01 : f32
      %117 = vector.broadcast %cst_48 : f32 to vector<48x1xf32>
      %118 = arith.select %116, %117, %102 : vector<48x1xi1>, vector<48x1xf32>
      %cst_49 = arith.constant 5.000000e-01 : f32
      %119 = vector.broadcast %cst_49 : f32 to vector<48x1xf32>
      %120 = arith.select %116, %119, %105 : vector<48x1xi1>, vector<48x1xf32>
      %cst_50 = arith.constant 2.000000e+00 : f32
      %121 = vector.broadcast %cst_50 : f32 to vector<48x1xf32>
      %122 = arith.select %116, %121, %108 : vector<48x1xi1>, vector<48x1xf32>
      %cst_51 = arith.constant 8.000000e+00 : f32
      %123 = vector.broadcast %cst_51 : f32 to vector<48x1xf32>
      %124 = arith.select %116, %123, %111 : vector<48x1xi1>, vector<48x1xf32>
      %cst_52 = arith.constant 8.000000e+00 : f32
      %125 = vector.broadcast %cst_52 : f32 to vector<48x1xf32>
      %126 = arith.select %116, %125, %114 : vector<48x1xi1>, vector<48x1xf32>
      %127 = arith.addf %97, %118 : vector<48x1xf32>
      %128 = arith.mulf %127, %120 : vector<48x1xf32>
      %129 = math.floor %128 : vector<48x1xf32>
      %130 = arith.mulf %129, %122 : vector<48x1xf32>
      %131 = arith.subf %127, %130 : vector<48x1xf32>
      %132 = arith.mulf %131, %124 : vector<48x1xf32>
      %cst_53 = arith.constant 5.000000e-01 : f32
      %133 = vector.broadcast %cst_53 : f32 to vector<48x1xf32>
      %134 = arith.addf %129, %133 : vector<48x1xf32>
      %135 = arith.mulf %134, %126 : vector<48x1xf32>
      %136 = vector.shape_cast %8 : vector<1x36xi1> to vector<1x36xi1>
      %137 = vector.broadcast %136 : vector<1x36xi1> to vector<48x36xi1>
      %138 = vector.shape_cast %132 : vector<48x1xf32> to vector<48x1xf32>
      %139 = vector.broadcast %138 : vector<48x1xf32> to vector<48x36xf32>
      %140 = vector.shape_cast %135 : vector<48x1xf32> to vector<48x1xf32>
      %141 = vector.broadcast %140 : vector<48x1xf32> to vector<48x36xf32>
      %142 = arith.select %137, %139, %141 : vector<48x36xi1>, vector<48x36xf32>
      %143 = vector.shape_cast %8 : vector<1x36xi1> to vector<1x36xi1>
      %144 = vector.broadcast %143 : vector<1x36xi1> to vector<48x36xi1>
      %145 = vector.shape_cast %124 : vector<48x1xf32> to vector<48x1xf32>
      %146 = vector.broadcast %145 : vector<48x1xf32> to vector<48x36xf32>
      %147 = vector.shape_cast %126 : vector<48x1xf32> to vector<48x1xf32>
      %148 = vector.broadcast %147 : vector<48x1xf32> to vector<48x36xf32>
      %149 = arith.select %144, %146, %148 : vector<48x36xi1>, vector<48x36xf32>
      %150 = vector.broadcast %81 : vector<1x36xf32> to vector<48x36xf32>
      %151 = arith.mulf %150, %149 : vector<48x36xf32>
      %152 = arith.addf %142, %151 : vector<48x36xf32>
      %c0_54 = arith.constant 0 : index
      %c0_55 = arith.constant 0 : index
      %153 = vector.load %arg2[%c0_54, %c0_55] : memref<48x36xf32, #tpu.memory_space<vmem>>, vector<48x36xf32>
      tpu.vector_store %arg2[%c0_54, %c0_55], %152 {strides = array<i32>} : memref<48x36xf32, #tpu.memory_space<vmem>>, vector<48x36xf32>,
    } else {
    }
    return
  }
  func.func @transform_0(%arg0: i32, %arg1: memref<8x2xf32, #tpu.memory_space<smem>>) -> (i32, i32) {
    %c0_i32 = arith.constant 0 : i32
    %c0_i32_0 = arith.constant 0 : i32
    return %arg0, %c0_i32 : i32, i32
  }
}

</mosaic_0001>

<llo_original>
// kernel: tpu_custom_call.1
$region0: #{tpu_custom_call.1}
  #allocation0 [shape = 'u32[]', space=smem, size = 0x4, offset = 0x4, fixed_abs, tag = 'smem constant byte address 0x4 - core index']
  #allocation1 [shape = 'u32[144,128]{1,0:T(1,128)}', space=vmem, size = 0x12000, scoped, tag = 'internal scratch']
  #allocation2 [shape = 's32[1]{0}', space=sflag, size = 0x4, scoped, tag = 'scoped memory for tpu_custom_call.1']
  #allocation3 [shape = 'u8[4096]{0}', space=smem, size = 0x1000, scoped, tag = 'prefetched SMEM operand 0']
  %s0 = inlined_call_operand.vmem [shape: f32[8,2], index: 0, kind: input, shape index: {}]
  %s1 = inlined_call_operand.vmem [shape: f32[84,36], index: 1, kind: output, shape index: {}]
  %s2 = sld [smem:[#allocation0]]
  $region81: #{tpu_custom_call.1} parent=0
    _
  %s4 = ssub.s32 1, %s2
  %s5 = scalar_select 0, %s4, %s2
  %s6 = sshll.u32 %s0, 4
  %s7 = int_to_ptr.vmem [resolvable:$true] %s6
  %9 = dma.vmem_to_smem %s7, 128, [#allocation3], [#allocation2]
  %10 = dma.done [#allocation2], 128
  %11 = sfence
  $region1: #{tpu_custom_call.1} parent=0
    #allocation4 [shape = 'u8[49152]{0}', space=vmem, size = 0xc000, scoped, tag = 'output window, operand 0']
    loop: start=0, step=1, limit=3
    $region2: #{tpu_custom_call.1} parent=1 // loop_pre_header
      _
    $region3: #{tpu_custom_call.1} parent=1 // loop_header
      %s13 = sphi 0, %s17
      %p14 = scmp.ge.s32.totalorder %s13, 3
      %s22 = sphi 0, %s24
      %s25 = sphi 0, %s22
      %s35 = sphi 0, %s25
    $region4: #{tpu_custom_call.1} parent=1 // loop_header_branch
      %16 = sbr.rel (%p14) target = $region8
    $region5: #{tpu_custom_call.1} parent=1 // loop_body
      %s18 = ssub.s32 %s13, 1
      %s19 = sadd.s32 %s13, 1
      %s20 = ssub.s32 %s13, %s19
      %p21 = scmp.eq.s32.totalorder %s20, 0
      %s23 = sadd.s32 %s22, 1
      %s24 = scalar_select %p21, %s22, %s23
      %p26 = pneg %p21
      %p27 = scmp.eq.s32.totalorder %s13, 1
      %p28 = por %p26, %p27
      %p29 = scmp.ne.s32.totalorder %s22, %s25
      %p30 = scmp.eq.s32.totalorder %s13, 0
      %p31 = por %p29, %p30
      %p32 = scmp.ne.s32.totalorder %s22, %s25
      %p33 = scmp.eq.s32.totalorder %s18, 1
      %p34 = por %p32, %p33
      %p36 = scmp.ne.s32.totalorder %s25, %s35
      %p37 = scmp.eq.s32.totalorder %s18, 0
      %p38 = por %p36, %p37
      %p39 = scmp.lt.s32.totalorder %s13, 2
      // Predicated region
      $region9: #{tpu_custom_call.1} parent=5 // pred_check
        %p40 = pneg %p39
      $region10: #{tpu_custom_call.1} parent=5 // pred_check_branch
        %42 = sbr.rel (%p40) target = $region12
      $region11: #{tpu_custom_call.1} parent=5 // pred_region
        %p43 = pneg %p31
        %p44 = pneg %p28
        %s45 = sand.u32 %s22, 1
        %s46 = sand.u32 %s22, 1
        %s47 = smul.addr %s46, 48
        %s48 = scalar_lea.vmem [#allocation4], %s47
        %s49 = smul.u32 6, %s13
        %s50 = ssub.s32 11, %s49
        %p51 = scmp.lt.s32.totalorder %s50, 6
        %s52 = scalar_select %p51, %s50, 6
        %s53 = smul.u32 128, %s52
        %v54 = vlaneseq
        %v55 = vand.u32 %v54, 127
        %v56 = vand.u32 %v55, 3
        %v57 = vshra.s32 %v55, 2
        %v58 = vand.u32 %v56, 1
        %vm59 = vcmp.eq.s32.totalorder %v58, 0
        %vm60 = vcmp.ge.s32.totalorder %v56, 2
        %v61 = vsel %vm60, 1.0, -1.0
        %vm62 = vcmp.eq.s32.totalorder %v57, 1
        %v63 = vsel %vm62, 2.0, 2.828427
        %vm64 = vcmp.eq.s32.totalorder %v57, 2
        %v65 = vsel %vm64, 1.4142135, %v63
        %vm66 = vcmp.eq.s32.totalorder %v57, 3
        %v67 = vsel %vm66, 3.5635948, %v65
        %vm68 = vcmp.eq.s32.totalorder %v57, 4
        %v69 = vsel %vm68, 2.5198421, %v67
        %vm70 = vcmp.eq.s32.totalorder %v57, 5
        %v71 = vsel %vm70, 1.7817974, %v69
        %vm72 = vcmp.eq.s32.totalorder %v57, 6
        %v73 = vsel %vm72, 4.489848, %v71
        %vm74 = vcmp.eq.s32.totalorder %v57, 7
        %v75 = vsel %vm74, 3.174802, %v73
        %vm76 = vcmp.eq.s32.totalorder %v57, 8
        %v77 = vsel %vm76, 2.244924, %v75
        %v78 = vsel %vm62, 2.0, 1.4142135
        %v79 = vsel %vm64, 2.828427, %v78
        %v80 = vsel %vm66, 1.7817974, %v79
        %v81 = vsel %vm68, 2.5198421, %v80
        %v82 = vsel %vm70, 3.5635948, %v81
        %v83 = vsel %vm72, 2.244924, %v82
        %v84 = vsel %vm74, 3.174802, %v83
        %v85 = vsel %vm76, 4.489848, %v84
        %v86 = vsel %vm59, %v77, %v85
        %v87 = vmul.f32 %v61, %v86
        %v88 = vlaneseq
        %v89 = vshrl.u32 %v88, 7
        %v90 = vadd.s32 %v89, 8
        %v91 = vadd.s32 %v89, 16
        %v92 = vadd.s32 %v89, 24
        %v93 = vadd.s32 %v89, 32
        %v94 = vadd.s32 %v89, 40
        %v95 = vcvt.s32.f32 %v89
        %v96 = vcvt.s32.f32 %v90
        %v97 = vcvt.s32.f32 %v91
        %v98 = vcvt.s32.f32 %v92
        %v99 = vcvt.s32.f32 %v93
        %v100 = vcvt.s32.f32 %v94
        %s101 = sld [smem:[#allocation3 + %s13]]
        %p102 = scmp.gt.f32.partialorder %s101, 0.5
        // Predicated region
        $region13: #{tpu_custom_call.1} parent=11 // pred_check
          %p103 = pneg %p102
        $region14: #{tpu_custom_call.1} parent=11 // pred_check_branch
          %105 = sbr.rel (%p103) target = $region16
        $region15: #{tpu_custom_call.1} parent=11 // pred_region
          %s106 = sshra.s32 %s13, 7
          %s107 = sand.u32 %s13, 127
          %s108 = sadd.s32 %s106, 1
          %s109 = smul.u32 %s108, 128
          %s110 = sshra.s32 %s13, 7
          %s111 = sand.u32 %s13, 127
          %s112 = sadd.s32 %s109, %s111
          %s113 = sld [smem:[#allocation3 + %s112]]
          %s114 = sadd.s32 %s106, 2
          %s115 = smul.u32 %s114, 128
          %s116 = sadd.s32 %s115, %s111
          %s117 = sld [smem:[#allocation3 + %s116]]
          %s118 = sadd.s32 %s106, 3
          %s119 = smul.u32 %s118, 128
          %s120 = sadd.s32 %s119, %s111
          %s121 = sld [smem:[#allocation3 + %s120]]
          %s122 = sadd.s32 %s106, 4
          %s123 = smul.u32 %s122, 128
          %s124 = sadd.s32 %s123, %s111
          %s125 = sld [smem:[#allocation3 + %s124]]
          %s126 = sadd.s32 %s106, 5
          %s127 = smul.u32 %s126, 128
          %s128 = sadd.s32 %s127, %s111
          %s129 = sld [smem:[#allocation3 + %s128]]
          %s130 = sadd.s32 %s106, 6
          %s131 = smul.u32 %s130, 128
          %s132 = sadd.s32 %s131, %s111
          %s133 = sld [smem:[#allocation3 + %s132]]
          %v134 = vstv %s113
          %v135 = vadd.f32 %v134, %v95
          %v136 = vadd.f32 %v134, %v96
          %v137 = vadd.f32 %v134, %v97
          %v138 = vadd.f32 %v134, %v98
          %v139 = vadd.f32 %v134, %v99
          %v140 = vadd.f32 %v134, %v100
          %v141 = vstv %s125
          %v142 = vmul.f32 %v135, %v141
          %v143 = vmul.f32 %v136, %v141
          %v144 = vmul.f32 %v137, %v141
          %v145 = vmul.f32 %v138, %v141
          %v146 = vmul.f32 %v139, %v141
          %v147 = vmul.f32 %v140, %v141
          %v148 = vfloor.f32 %v142
          %v149 = vfloor.f32 %v143
          %v150 = vfloor.f32 %v144
          %v151 = vfloor.f32 %v145
          %v152 = vfloor.f32 %v146
          %v153 = vfloor.f32 %v147
          %v154 = vstv %s121
          %v155 = vmul.f32 %v148, %v154
          %v156 = vmul.f32 %v149, %v154
          %v157 = vmul.f32 %v150, %v154
          %v158 = vmul.f32 %v151, %v154
          %v159 = vmul.f32 %v152, %v154
          %v160 = vmul.f32 %v153, %v154
          %v161 = vsub.f32 %v135, %v155
          %v162 = vsub.f32 %v136, %v156
          %v163 = vsub.f32 %v137, %v157
          %v164 = vsub.f32 %v138, %v158
          %v165 = vsub.f32 %v139, %v159
          %v166 = vsub.f32 %v140, %v160
          %v167 = vstv %s129
          %v168 = vmul.f32 %v161, %v167
          %v169 = vmul.f32 %v162, %v167
          %v170 = vmul.f32 %v163, %v167
          %v171 = vmul.f32 %v164, %v167
          %v172 = vmul.f32 %v165, %v167
          %v173 = vmul.f32 %v166, %v167
          %v174 = vstv %s117
          %v175 = vadd.f32 %v174, %v148
          %v176 = vadd.f32 %v174, %v149
          %v177 = vadd.f32 %v174, %v150
          %v178 = vadd.f32 %v174, %v151
          %v179 = vadd.f32 %v174, %v152
          %v180 = vadd.f32 %v174, %v153
          %v181 = vstv %s133
          %v182 = vmul.f32 %v175, %v181
          %v183 = vmul.f32 %v176, %v181
          %v184 = vmul.f32 %v177, %v181
          %v185 = vmul.f32 %v178, %v181
          %v186 = vmul.f32 %v179, %v181
          %v187 = vmul.f32 %v180, %v181
          %v188 = vsel %vm59, 1, 0
          %vm189 = vcmp.eq.s32.totalorder %v188, 1
          %v190 = vsel %vm189, %v168, %v182
          %v191 = vsel %vm189, %v169, %v183
          %v192 = vsel %vm189, %v170, %v184
          %v193 = vsel %vm189, %v171, %v185
          %v194 = vsel %vm189, %v172, %v186
          %v195 = vsel %vm189, %v173, %v187
          %v196 = vsel %vm59, %v167, %v181
          %v197 = vmul.f32 %v87, %v196
          %v198 = vadd.f32 %v190, %v197
          %v199 = vadd.f32 %v191, %v197
          %v200 = vadd.f32 %v192, %v197
          %v201 = vadd.f32 %v193, %v197
          %v202 = vadd.f32 %v194, %v197
          %v203 = vadd.f32 %v195, %v197
          %vm204 = vcmask 293888
          %205 = vst.msk [vmem:[%s48] sm:$0xff] %vm204, %v198
          %206 = vst.msk [vmem:[%s48 + $0x8] sm:$0xff] %vm204, %v199
          %207 = vst.msk [vmem:[%s48 + $0x10] sm:$0xff] %vm204, %v200
          %208 = vst.msk [vmem:[%s48 + $0x18] sm:$0xff] %vm204, %v201
          %209 = vst.msk [vmem:[%s48 + $0x20] sm:$0xff] %vm204, %v202
          %210 = vst.msk [vmem:[%s48 + $0x28] sm:$0xff] %vm204, %v203
        $region16: #{tpu_custom_call.1} parent=11 // pred_fallthru
          _
        %s211 = sld [smem:[#allocation3 + %s13]]
        %p212 = scmp.lt.f32.partialorder %s211, 0.5
        // Predicated region
        $region17: #{tpu_custom_call.1} parent=11 // pred_check
          %p213 = pneg %p212
        $region18: #{tpu_custom_call.1} parent=11 // pred_check_branch
          %215 = sbr.rel (%p213) target = $region20
        $region19: #{tpu_custom_call.1} parent=11 // pred_region
          %s216 = smul.u32 %s13, 48
          %s217 = scvt.s32.f32 %s216
          %v218 = vstv %s217
          %v219 = vadd.f32 %v95, %v218
          %v220 = vadd.f32 %v96, %v218
          %v221 = vadd.f32 %v97, %v218
          %v222 = vadd.f32 %v98, %v218
          %v223 = vadd.f32 %v99, %v218
          %v224 = vadd.f32 %v100, %v218
          %vm225 = vcmp.ge.f32.partialorder %v219, 64.0
          %vm226 = vcmp.ge.f32.partialorder %v220, 64.0
          %vm227 = vcmp.ge.f32.partialorder %v221, 64.0
          %vm228 = vcmp.ge.f32.partialorder %v222, 64.0
          %vm229 = vcmp.ge.f32.partialorder %v223, 64.0
          %vm230 = vcmp.ge.f32.partialorder %v224, 64.0
          %v231 = vsel %vm225, -63.5, 0.5
          %v232 = vsel %vm226, -63.5, 0.5
          %v233 = vsel %vm227, -63.5, 0.5
          %v234 = vsel %vm228, -63.5, 0.5
          %v235 = vsel %vm229, -63.5, 0.5
          %v236 = vsel %vm230, -63.5, 0.5
          %v237 = vsel %vm225, 0.25, 0.125
          %v238 = vsel %vm226, 0.25, 0.125
          %v239 = vsel %vm227, 0.25, 0.125
          %v240 = vsel %vm228, 0.25, 0.125
          %v241 = vsel %vm229, 0.25, 0.125
          %v242 = vsel %vm230, 0.25, 0.125
          %v243 = vsel %vm225, 4.0, 8.0
          %v244 = vsel %vm226, 4.0, 8.0
          %v245 = vsel %vm227, 4.0, 8.0
          %v246 = vsel %vm228, 4.0, 8.0
          %v247 = vsel %vm229, 4.0, 8.0
          %v248 = vsel %vm230, 4.0, 8.0
          %v249 = vsel %vm225, 4.0, 2.0
          %v250 = vsel %vm226, 4.0, 2.0
          %v251 = vsel %vm227, 4.0, 2.0
          %v252 = vsel %vm228, 4.0, 2.0
          %v253 = vsel %vm229, 4.0, 2.0
          %v254 = vsel %vm230, 4.0, 2.0
          %vm255 = vcmp.ge.f32.partialorder %v219, 80.0
          %vm256 = vcmp.ge.f32.partialorder %v220, 80.0
          %vm257 = vcmp.ge.f32.partialorder %v221, 80.0
          %vm258 = vcmp.ge.f32.partialorder %v222, 80.0
          %vm259 = vcmp.ge.f32.partialorder %v223, 80.0
          %vm260 = vcmp.ge.f32.partialorder %v224, 80.0
          %v261 = vsel %vm255, -79.5, %v231
          %v262 = vsel %vm256, -79.5, %v232
          %v263 = vsel %vm257, -79.5, %v233
          %v264 = vsel %vm258, -79.5, %v234
          %v265 = vsel %vm259, -79.5, %v235
          %v266 = vsel %vm260, -79.5, %v236
          %v267 = vsel %vm255, 0.5, %v237
          %v268 = vsel %vm256, 0.5, %v238
          %v269 = vsel %vm257, 0.5, %v239
          %v270 = vsel %vm258, 0.5, %v240
          %v271 = vsel %vm259, 0.5, %v241
          %v272 = vsel %vm260, 0.5, %v242
          %v273 = vsel %vm255, 2.0, %v243
          %v274 = vsel %vm256, 2.0, %v244
          %v275 = vsel %vm257, 2.0, %v245
          %v276 = vsel %vm258, 2.0, %v246
          %v277 = vsel %vm259, 2.0, %v247
          %v278 = vsel %vm260, 2.0, %v248
          %v279 = vsel %vm255, 8.0, %v249
          %v280 = vsel %vm256, 8.0, %v250
          %v281 = vsel %vm257, 8.0, %v251
          %v282 = vsel %vm258, 8.0, %v252
          %v283 = vsel %vm259, 8.0, %v253
          %v284 = vsel %vm260, 8.0, %v254
          %v285 = vadd.f32 %v219, %v261
          %v286 = vadd.f32 %v220, %v262
          %v287 = vadd.f32 %v221, %v263
          %v288 = vadd.f32 %v222, %v264
          %v289 = vadd.f32 %v223, %v265
          %v290 = vadd.f32 %v224, %v266
          %v291 = vmul.f32 %v285, %v267
          %v292 = vmul.f32 %v286, %v268
          %v293 = vmul.f32 %v287, %v269
          %v294 = vmul.f32 %v288, %v270
          %v295 = vmul.f32 %v289, %v271
          %v296 = vmul.f32 %v290, %v272
          %v297 = vfloor.f32 %v291
          %v298 = vfloor.f32 %v292
          %v299 = vfloor.f32 %v293
          %v300 = vfloor.f32 %v294
          %v301 = vfloor.f32 %v295
          %v302 = vfloor.f32 %v296
          %v303 = vmul.f32 %v297, %v273
          %v304 = vmul.f32 %v298, %v274
          %v305 = vmul.f32 %v299, %v275
          %v306 = vmul.f32 %v300, %v276
          %v307 = vmul.f32 %v301, %v277
          %v308 = vmul.f32 %v302, %v278
          %v309 = vsub.f32 %v285, %v303
          %v310 = vsub.f32 %v286, %v304
          %v311 = vsub.f32 %v287, %v305
          %v312 = vsub.f32 %v288, %v306
          %v313 = vsub.f32 %v289, %v307
          %v314 = vsub.f32 %v290, %v308
          %v315 = vmul.f32 %v309, %v279
          %v316 = vmul.f32 %v310, %v280
          %v317 = vmul.f32 %v311, %v281
          %v318 = vmul.f32 %v312, %v282
          %v319 = vmul.f32 %v313, %v283
          %v320 = vmul.f32 %v314, %v284
          %v321 = vadd.f32 %v297, 0.5
          %v322 = vadd.f32 %v298, 0.5
          %v323 = vadd.f32 %v299, 0.5
          %v324 = vadd.f32 %v300, 0.5
          %v325 = vadd.f32 %v301, 0.5
          %v326 = vadd.f32 %v302, 0.5
          %v327 = vmul.f32 %v321, %v279
          %v328 = vmul.f32 %v322, %v280
          %v329 = vmul.f32 %v323, %v281
          %v330 = vmul.f32 %v324, %v282
          %v331 = vmul.f32 %v325, %v283
          %v332 = vmul.f32 %v326, %v284
          %v333 = vsel %vm59, 1, 0
          %vm334 = vcmp.eq.s32.totalorder %v333, 1
          %v335 = vsel %vm334, %v315, %v327
          %v336 = vsel %vm334, %v316, %v328
          %v337 = vsel %vm334, %v317, %v329
          %v338 = vsel %vm334, %v318, %v330
          %v339 = vsel %vm334, %v319, %v331
          %v340 = vsel %vm334, %v320, %v332
          %v341 = vmul.f32 %v87, %v279
          %v342 = vmul.f32 %v87, %v280
          %v343 = vmul.f32 %v87, %v281
          %v344 = vmul.f32 %v87, %v282
          %v345 = vmul.f32 %v87, %v283
          %v346 = vmul.f32 %v87, %v284
          %v347 = vadd.f32 %v335, %v341
          %v348 = vadd.f32 %v336, %v342
          %v349 = vadd.f32 %v337, %v343
          %v350 = vadd.f32 %v338, %v344
          %v351 = vadd.f32 %v339, %v345
          %v352 = vadd.f32 %v340, %v346
          %vm353 = vcmask 293888
          %354 = vst.msk [vmem:[%s48] sm:$0xff] %vm353, %v347
          %355 = vst.msk [vmem:[%s48 + $0x8] sm:$0xff] %vm353, %v348
          %356 = vst.msk [vmem:[%s48 + $0x10] sm:$0xff] %vm353, %v349
          %357 = vst.msk [vmem:[%s48 + $0x18] sm:$0xff] %vm353, %v350
          %358 = vst.msk [vmem:[%s48 + $0x20] sm:$0xff] %vm353, %v351
          %359 = vst.msk [vmem:[%s48 + $0x28] sm:$0xff] %vm353, %v352
        $region20: #{tpu_custom_call.1} parent=11 // pred_fallthru
          _
        %s360 = sand.u32 %s22, 1
        %s361 = sand.u32 %s22, 1
        %s362 = smul.addr %s361, 48
        %s363 = scalar_lea.vmem [#allocation4], %s362
        // Predicated region
        $region21: #{tpu_custom_call.1} parent=11 // pred_check
          %p364 = pneg %p28
        $region22: #{tpu_custom_call.1} parent=11 // pred_check_branch
          %366 = sbr.rel (%p364) target = $region24
        $region23: #{tpu_custom_call.1} parent=11 // pred_region
          %s367 = smul.u32 6, %s13
          %s368 = ssub.s32 11, %s367
          %p369 = scmp.lt.s32.totalorder %s368, 6
          %s370 = scalar_select %p369, %s368, 6
          %s371 = smul.u32 128, %s370
          %p372 = scmp.ne.s32.totalorder 0, %s371
          %s373 = smul.addr %s367, 8
          %s374 = scalar_lea.vmem %s1, %s373
          // Predicated region
          $region25: #{tpu_custom_call.1} parent=23 // pred_check
            %p375 = pneg %p372
          $region26: #{tpu_custom_call.1} parent=23 // pred_check_branch
            %377 = sbr.rel (%p375) target = $region28
          $region27: #{tpu_custom_call.1} parent=23 // pred_region
            // Predicated region
            $region29: #{tpu_custom_call.1} parent=27 // pred_check
              _
            $region30: #{tpu_custom_call.1} parent=27 // pred_check_branch
              %379 = sbr.rel (0) target = $region32
            $region31: #{tpu_custom_call.1} parent=27 // pred_region
              // Predicated region
              $region51: #{tpu_custom_call.1} parent=31 // pred_check
                _
              $region52: #{tpu_custom_call.1} parent=31 // pred_check_branch
                %440 = sbr.rel (0) target = $region54
              $region53: #{tpu_custom_call.1} parent=31 // pred_region
                %s441 = sdiv.u32.pop %s370, 6
                %s442 = srem.u32.pop %s370, 6
                // While loop
                $region55: #{tpu_custom_call.1} parent=53 // loop_pre_header
                  _
                $region56: #{tpu_custom_call.1} parent=53 // loop_header
                  %s444 = sphi 0, %s446
                  %p445 = scmp.ge.s32.totalorder %s444, %s441
                  %s449 = sphi 0, %s466
                  %s450 = sphi %s363, %s469
                  %s451 = sphi %s374, %s470
                $region57: #{tpu_custom_call.1} parent=53 // loop_header_branch
                  %448 = sbr.rel (%p445) target = $region61
                $region58: #{tpu_custom_call.1} parent=53 // loop_body
                  %v452 = vld [vmem:[%s450] sm:$0xff]
                  %453 = vst [vmem:[%s451] sm:$0xff] %v452
                  %v454 = vld [vmem:[%s450 + $0x8] sm:$0xff]
                  %455 = vst [vmem:[%s451 + $0x8] sm:$0xff] %v454
                  %v456 = vld [vmem:[%s450 + $0x10] sm:$0xff]
                  %457 = vst [vmem:[%s451 + $0x10] sm:$0xff] %v456
                  %v458 = vld [vmem:[%s450 + $0x18] sm:$0xff]
                  %459 = vst [vmem:[%s451 + $0x18] sm:$0xff] %v458
                  %v460 = vld [vmem:[%s450 + $0x20] sm:$0xff]
                  %461 = vst [vmem:[%s451 + $0x20] sm:$0xff] %v460
                  %v462 = vld [vmem:[%s450 + $0x28] sm:$0xff]
                  %463 = vst [vmem:[%s451 + $0x28] sm:$0xff] %v462
                  %s464 = sadd.s32 1, %s449
                  %p465 = scmp.ge.s32.totalorder %s464, %s441
                  %s466 = scalar_select %p465, 0, %s464
                  %s467 = smul.u32 %s466, 48
                  %s468 = smul.u32 %s466, 48
                  %s469 = scalar_lea.vmem %s363, %s467 [#allocation4]
                  %s470 = scalar_lea.vmem %s374, %s468
                $region59: #{tpu_custom_call.1} parent=53 // loop_footer
                  %s446 = sadd.s32 %s444, 1
                $region60: #{tpu_custom_call.1} parent=53 // loop_footer_branch
                  %443 = sbr.rel target = $region56
                $region61: #{tpu_custom_call.1} parent=53 // loop_exit
                  _
                %s471 = sdiv.u32.pop %s370, 6
                %s472 = srem.u32.pop %s370, 6
                %s473 = smul.u32 %s471, 6
                %s474 = smul.u32 8, %s473
                %s475 = scalar_lea.vmem %s363, %s474 [#allocation4]
                %s476 = smul.u32 8, %s473
                %s477 = scalar_lea.vmem %s374, %s476
                // While loop
                $region62: #{tpu_custom_call.1} parent=53 // loop_pre_header
                  _
                $region63: #{tpu_custom_call.1} parent=53 // loop_header
                  %s479 = sphi 0, %s481
                  %p480 = scmp.ge.s32.totalorder %s479, %s472
                  %s484 = sphi 0, %s491
                  %s485 = sphi %s475, %s494
                  %s486 = sphi %s477, %s495
                $region64: #{tpu_custom_call.1} parent=53 // loop_header_branch
                  %483 = sbr.rel (%p480) target = $region68
                $region65: #{tpu_custom_call.1} parent=53 // loop_body
                  %v487 = vld [vmem:[%s485] sm:$0xff]
                  %488 = vst [vmem:[%s486] sm:$0xff] %v487
                  %s489 = sadd.s32 1, %s484
                  %p490 = scmp.ge.s32.totalorder %s489, %s472
                  %s491 = scalar_select %p490, 0, %s489
                  %s492 = smul.u32 %s491, 8
                  %s493 = smul.u32 %s491, 8
                  %s494 = scalar_lea.vmem %s475, %s492 [#allocation4]
                  %s495 = scalar_lea.vmem %s477, %s493
                $region66: #{tpu_custom_call.1} parent=53 // loop_footer
                  %s481 = sadd.s32 %s479, 1
                $region67: #{tpu_custom_call.1} parent=53 // loop_footer_branch
                  %478 = sbr.rel target = $region63
                $region68: #{tpu_custom_call.1} parent=53 // loop_exit
                  _
              $region54: #{tpu_custom_call.1} parent=31 // pred_fallthru
                _
              // Predicated region
              $region69: #{tpu_custom_call.1} parent=31 // pred_check
                _
              $region70: #{tpu_custom_call.1} parent=31 // pred_check_branch
                %497 = sbr.rel target = $region72
              $region71: #{tpu_custom_call.1} parent=31 // pred_region
                _
              $region72: #{tpu_custom_call.1} parent=31 // pred_fallthru
                _
            $region32: #{tpu_custom_call.1} parent=27 // pred_fallthru
              _
            // Predicated region
            $region33: #{tpu_custom_call.1} parent=27 // pred_check
              _
            $region34: #{tpu_custom_call.1} parent=27 // pred_check_branch
              %381 = sbr.rel target = $region36
            $region35: #{tpu_custom_call.1} parent=27 // pred_region
              %s383 = ssub.s32 256, 1
              %s384 = sdiv.u32.pop %s370, 6
              %s385 = srem.u32.pop %s370, 6
              // While loop
              $region37: #{tpu_custom_call.1} parent=35 // loop_pre_header
                _
              $region38: #{tpu_custom_call.1} parent=35 // loop_header
                %s387 = sphi 0, %s389
                %p388 = scmp.ge.s32.totalorder %s387, %s384
                %s392 = sphi 0, %s409
                %s393 = sphi %s363, %s412
                %s394 = sphi %s374, %s413
              $region39: #{tpu_custom_call.1} parent=35 // loop_header_branch
                %391 = sbr.rel (%p388) target = $region43
              $region40: #{tpu_custom_call.1} parent=35 // loop_body
                %v395 = vld [vmem:[%s393] sm:%s383]
                %396 = vst [vmem:[%s394] sm:%s383] %v395
                %v397 = vld [vmem:[%s393 + $0x8] sm:%s383]
                %398 = vst [vmem:[%s394 + $0x8] sm:%s383] %v397
                %v399 = vld [vmem:[%s393 + $0x10] sm:%s383]
                %400 = vst [vmem:[%s394 + $0x10] sm:%s383] %v399
                %v401 = vld [vmem:[%s393 + $0x18] sm:%s383]
                %402 = vst [vmem:[%s394 + $0x18] sm:%s383] %v401
                %v403 = vld [vmem:[%s393 + $0x20] sm:%s383]
                %404 = vst [vmem:[%s394 + $0x20] sm:%s383] %v403
                %v405 = vld [vmem:[%s393 + $0x28] sm:%s383]
                %406 = vst [vmem:[%s394 + $0x28] sm:%s383] %v405
                %s407 = sadd.s32 1, %s392
                %p408 = scmp.ge.s32.totalorder %s407, %s384
                %s409 = scalar_select %p408, 0, %s407
                %s410 = smul.u32 %s409, 48
                %s411 = smul.u32 %s409, 48
                %s412 = scalar_lea.vmem %s363, %s410 [#allocation4]
                %s413 = scalar_lea.vmem %s374, %s411
              $region41: #{tpu_custom_call.1} parent=35 // loop_footer
                %s389 = sadd.s32 %s387, 1
              $region42: #{tpu_custom_call.1} parent=35 // loop_footer_branch
                %386 = sbr.rel target = $region38
              $region43: #{tpu_custom_call.1} parent=35 // loop_exit
                _
              %s414 = sdiv.u32.pop %s370, 6
              %s415 = srem.u32.pop %s370, 6
              %s416 = smul.u32 %s414, 6
              %s417 = smul.u32 8, %s416
              %s418 = scalar_lea.vmem %s363, %s417 [#allocation4]
              %s419 = smul.u32 8, %s416
              %s420 = scalar_lea.vmem %s374, %s419
              // While loop
              $region44: #{tpu_custom_call.1} parent=35 // loop_pre_header
                _
              $region45: #{tpu_custom_call.1} parent=35 // loop_header
                %s422 = sphi 0, %s424
                %p423 = scmp.ge.s32.totalorder %s422, %s415
                %s427 = sphi 0, %s434
                %s428 = sphi %s418, %s437
                %s429 = sphi %s420, %s438
              $region46: #{tpu_custom_call.1} parent=35 // loop_header_branch
                %426 = sbr.rel (%p423) target = $region50
              $region47: #{tpu_custom_call.1} parent=35 // loop_body
                %v430 = vld [vmem:[%s428] sm:%s383]
                %431 = vst [vmem:[%s429] sm:%s383] %v430
                %s432 = sadd.s32 1, %s427
                %p433 = scmp.ge.s32.totalorder %s432, %s415
                %s434 = scalar_select %p433, 0, %s432
                %s435 = smul.u32 %s434, 8
                %s436 = smul.u32 %s434, 8
                %s437 = scalar_lea.vmem %s418, %s435 [#allocation4]
                %s438 = scalar_lea.vmem %s420, %s436
              $region48: #{tpu_custom_call.1} parent=35 // loop_footer
                %s424 = sadd.s32 %s422, 1
              $region49: #{tpu_custom_call.1} parent=35 // loop_footer_branch
                %421 = sbr.rel target = $region45
              $region50: #{tpu_custom_call.1} parent=35 // loop_exit
                _
            $region36: #{tpu_custom_call.1} parent=27 // pred_fallthru
              _
          $region28: #{tpu_custom_call.1} parent=23 // pred_fallthru
            _
          %498 = vnop
        $region24: #{tpu_custom_call.1} parent=11 // pred_fallthru
          _
      $region12: #{tpu_custom_call.1} parent=5 // pred_fallthru
        _
      %p499 = scmp.le.s32.totalorder 1, %s13
      // Predicated region
      $region73: #{tpu_custom_call.1} parent=5 // pred_check
        %p500 = pneg %p499
      $region74: #{tpu_custom_call.1} parent=5 // pred_check_branch
        %502 = sbr.rel (%p500) target = $region76
      $region75: #{tpu_custom_call.1} parent=5 // pred_region
        %s503 = ssub.s32 %s13, 1
        // Predicated region
        $region77: #{tpu_custom_call.1} parent=75 // pred_check
          %p504 = pneg %p34
        $region78: #{tpu_custom_call.1} parent=75 // pred_check_branch
          %506 = sbr.rel (%p504) target = $region80
        $region79: #{tpu_custom_call.1} parent=75 // pred_region
          %s507 = sand.u32 %s25, 1
          %s508 = sand.u32 %s25, 1
          %s509 = smul.addr %s508, 48
          %s510 = scalar_lea.vmem [#allocation4], %s509
        $region80: #{tpu_custom_call.1} parent=75 // pred_fallthru
          _
      $region76: #{tpu_custom_call.1} parent=5 // pred_fallthru
        _
    $region6: #{tpu_custom_call.1} parent=1 // loop_footer
      %s17 = sadd.s32 1, %s13
    $region7: #{tpu_custom_call.1} parent=1 // loop_footer_branch
      %12 = sbr.rel target = $region3
    $region8: #{tpu_custom_call.1} parent=1 // loop_exit
      _

</llo_original>
